<compile_context>
chip_gen: v6e
topology: v6e:2x2x1
jax: 0.10.0
libtpu: 0.0.40
codegen_flags: <defaults>
</compile_context>

<pallas_src>
import jax
import jax.numpy as jnp
from jax.experimental import pallas as pl
from jax.experimental.pallas import tpu as pltpu

HIGH = jax.lax.Precision.HIGHEST


# ------------------------------ fused kernel --------------------------------

def dual_fused_kernel(xt_ref, wb_ref, bb_ref, wfe_ref, bfe_ref, wcl_ref, bcl_ref,
                      emb_ref, head_ref):
    # xt_ref  : (B, HW, Cin)          input, channels-last (Cin on lanes)
    # wb_ref  : (Cin, CEMB_BLK)       Cemb block of base-model 1x1-conv weight
    # bb_ref  : (1, CEMB_BLK)         Cemb block of base-model bias
    # wfe_ref : (Cin, low_dim)        folded  w_base @ w_feat
    # bfe_ref : (1, low_dim)          folded  b_base @ w_feat + b_feat
    # wcl_ref : (low_dim, n_cluster)  eval-BN-folded clustering weight
    # bcl_ref : (1, n_cluster)        eval-BN-folded clustering bias
    # emb_ref : (B, HW, CEMB_BLK)     lane-dense emb7x7 slab for this Cemb block
    # head_ref: (1, B, PACK)          per-step packed [metric | l2norm(cluster) | 0]
    B, HW, Cin = xt_ref.shape
    low_dim = wfe_ref.shape[1]
    n_cluster = wcl_ref.shape[1]

    x = xt_ref[...]                                               # (B, HW, Cin)
    wb = wb_ref[...]                                              # (Cin, blk)
    bb = bb_ref[...]                                              # (1, blk)

    # --- base_model 1x1 conv for this Cemb block (lane-dense, MXU) -----------
    # Value accumulator -> single store per batch; no RMW on the output ref.
    for b in range(B):
        emb_ref[b] = jnp.dot(x[b], wb, preferred_element_type=jnp.float32) + bb

    # --- head: avgpool o conv o feat_ext algebraically folded ----------------
    # Tiny; recomputed identically at every grid step so the grid axis stays
    # fully parallel (each step owns its own head output slice).
    x_mean = jnp.mean(x, axis=1)                                  # (B, Cin)
    feats = jnp.dot(x_mean, wfe_ref[...],
                    preferred_element_type=jnp.float32) + bfe_ref[...]
    # l2norm with PyTorch-style eps clamp (eps = 1e-12 on the norm)
    inv_f = jax.lax.rsqrt(
        jnp.maximum(jnp.sum(feats * feats, axis=-1, keepdims=True), 1e-24))
    metric = feats * inv_f                                        # (B, low_dim)

    # clustering: eval-BN already folded into (wcl, bcl); eval-Dropout = identity.
    cluster = jnp.dot(metric, wcl_ref[...],
                      preferred_element_type=jnp.float32) + bcl_ref[...]
    inv_c = jax.lax.rsqrt(
        jnp.maximum(jnp.sum(cluster * cluster, axis=-1, keepdims=True), 1e-24))
    cluster_n = cluster * inv_c                                   # (B, n_cluster)

    # lane-packed head row for this grid step
    head_ref[...] = jnp.zeros(head_ref.shape, jnp.float32)
    head_ref[0, :, 0:low_dim] = metric
    head_ref[0, :, low_dim:low_dim + n_cluster] = cluster_n


# --------------------------------- wrapper ----------------------------------

def dual_model_forward(x_nchw, params):
    """x_nchw: (B, Cin, 7, 7) f32 -> (metric_out, l2norm(cluster_out), emb7x7)."""
    B, Cin, H, W = x_nchw.shape
    HW = H * W
    Cemb = params["w_base"].shape[1]
    low_dim = params["w_feat"].shape[1]
    n_cluster = params["w_cl"].shape[1]
    pack = max(128, ((low_dim + n_cluster + 127) // 128) * 128)

    # Cemb blocking for the grid (review: 128-256 per block)
    if Cemb % 256 == 0:
        blk = 256
    elif Cemb % 128 == 0:
        blk = 128
    else:
        blk = Cemb
    n_blk = Cemb // blk

    # Tiny channels-last transpose so the conv is a lane-dense (HW,Cin)@(Cin,blk).
    x_hwc = jnp.transpose(x_nchw.reshape(B, Cin, HW), (0, 2, 1))  # (B, HW, Cin)

    # One-time parameter folding (tiny; outside the kernel).
    w_feat_eff = jnp.dot(params["w_base"], params["w_feat"], precision=HIGH)   # (Cin, low_dim)
    b_feat_eff = jnp.dot(params["b_base"], params["w_feat"], precision=HIGH) \
        + params["b_feat"]                                                     # (1, low_dim)
    # eval-mode BatchNorm1d folded into the clustering Linear
    s = params["bn_gamma"] * jax.lax.rsqrt(params["bn_rv"] + 1e-5)             # (1, low_dim)
    w_cl_eff = params["w_cl"] * s.reshape(low_dim, 1)                          # (low_dim, n_cluster)
    b_cl_eff = params["b_cl"] + jnp.dot(params["bn_beta"] - params["bn_rm"] * s,
                                        params["w_cl"], precision=HIGH)        # (1, n_cluster)

    flops = 2 * B * HW * Cin * Cemb + 2 * B * Cin * low_dim \
        + 2 * B * low_dim * n_cluster
    bytes_accessed = 4 * (B * HW * Cin + Cin * Cemb + Cemb
                          + Cin * low_dim + low_dim + low_dim * n_cluster
                          + n_cluster + B * HW * Cemb + n_blk * B * pack)

    emb_hwc, head = pl.pallas_call(
        dual_fused_kernel,
        out_shape=(
            jax.ShapeDtypeStruct((B, HW, Cemb), jnp.float32),
            jax.ShapeDtypeStruct((n_blk, B, pack), jnp.float32),
        ),
        grid=(n_blk,),
        in_specs=[
            pl.BlockSpec((B, HW, Cin), lambda j: (0, 0, 0)),
            pl.BlockSpec((Cin, blk), lambda j: (0, j)),
            pl.BlockSpec((1, blk), lambda j: (0, j)),
            pl.BlockSpec((Cin, low_dim), lambda j: (0, 0)),
            pl.BlockSpec((1, low_dim), lambda j: (0, 0)),
            pl.BlockSpec((low_dim, n_cluster), lambda j: (0, 0)),
            pl.BlockSpec((1, n_cluster), lambda j: (0, 0)),
        ],
        out_specs=(
            pl.BlockSpec((B, HW, blk), lambda j: (0, 0, j)),
            pl.BlockSpec((1, B, pack), lambda j: (j, 0, 0)),
        ),
        compiler_params=pltpu.CompilerParams(dimension_semantics=("parallel",)),
        cost_estimate=pl.CostEstimate(flops=flops, transcendentals=4 * B,
                                      bytes_accessed=bytes_accessed),
    )(x_hwc, params["w_base"], params["b_base"],
      w_feat_eff, b_feat_eff, w_cl_eff, b_cl_eff)

    metric_out = head[0, :, :low_dim]
    cluster_norm = head[0, :, low_dim:low_dim + n_cluster]
    # lane-dense (B, HW, Cemb) -> NCHW (B, Cemb, 7, 7) in the wrapper
    emb7x7 = jnp.transpose(emb_hwc, (0, 2, 1)).reshape(B, Cemb, H, W)
    return metric_out, cluster_norm, emb7x7


# ----------------------------- pure-JAX reference ----------------------------

def reference_forward(x_nchw, params):
    B, Cin, H, W = x_nchw.shape
    Cemb = params["w_base"].shape[1]
    x_cl = jnp.transpose(x_nchw, (0, 2, 3, 1)).reshape(B * H * W, Cin)
    emb_cl = jnp.dot(x_cl, params["w_base"], precision=HIGH) + params["b_base"]
    emb7x7 = jnp.transpose(emb_cl.reshape(B, H, W, Cemb), (0, 3, 1, 2))
    emb = jnp.mean(emb_cl.reshape(B, H * W, Cemb), axis=1)
    feats = jnp.dot(emb, params["w_feat"], precision=HIGH) + params["b_feat"]
    metric = feats / jnp.maximum(jnp.linalg.norm(feats, axis=1, keepdims=True), 1e-12)
    s = params["bn_gamma"] / jnp.sqrt(params["bn_rv"] + 1e-5)
    bn = (metric - params["bn_rm"]) * s + params["bn_beta"]
    cluster = jnp.dot(bn, params["w_cl"], precision=HIGH) + params["b_cl"]
    cluster_n = cluster / jnp.maximum(
        jnp.linalg.norm(cluster, axis=1, keepdims=True), 1e-12)
    return metric, cluster_n, emb7x7


# ------------------------------ parameter init --------------------------------

def init_params(key, cin=4, cemb=1024, low_dim=32, n_cluster=16):
    ks = jax.random.split(key, 6)
    return {
        # synthetic base_model: 1x1 conv Cin -> Cemb
        "w_base": jax.random.normal(ks[0], (cin, cemb), jnp.float32) * 0.1,
        "b_base": jax.random.normal(ks[1], (1, cemb), jnp.float32) * 0.01,
        # feat_ext: Linear(1024, low_dim)
        "w_feat": jax.random.normal(ks[2], (cemb, low_dim), jnp.float32) * 0.03,
        "b_feat": jax.random.normal(ks[3], (1, low_dim), jnp.float32) * 0.01,
        # clustering: BatchNorm1d(low_dim) defaults (eval), Linear(low_dim, n_cluster)
        "bn_gamma": jnp.ones((1, low_dim), jnp.float32),
        "bn_beta": jnp.zeros((1, low_dim), jnp.float32),
        "bn_rm": jnp.zeros((1, low_dim), jnp.float32),
        "bn_rv": jnp.ones((1, low_dim), jnp.float32),
        "w_cl": jax.random.normal(ks[4], (low_dim, n_cluster), jnp.float32) * 0.1,
        "b_cl": jax.random.normal(ks[5], (1, n_cluster), jnp.float32) * 0.01,
    }


if __name__ == "__main__":
    key = jax.random.PRNGKey(0)
    kp, kx = jax.random.split(key)

    B, Cin, H, W = 2, 4, 7, 7          # 7x7 spatial is implied by AvgPool2d((7,7))
    params = init_params(kp, cin=Cin, cemb=1024, low_dim=32, n_cluster=16)
    x = jax.random.normal(kx, (B, Cin, H, W), jnp.float32)

    metric_out, cluster_norm, emb7x7 = dual_model_forward(x, params)
    jax.block_until_ready((metric_out, cluster_norm, emb7x7))

    # correctness vs pure-JAX reference of the same forward
    m_ref, c_ref, e_ref = reference_forward(x, params)
    assert emb7x7.shape == (B, 1024, H, W)
    assert metric_out.shape == (B, 32) and cluster_norm.shape == (B, 16)
    assert jnp.allclose(metric_out, m_ref, atol=1e-3, rtol=1e-3)
    assert jnp.allclose(cluster_norm, c_ref, atol=1e-3, rtol=1e-3)
    assert jnp.allclose(emb7x7, e_ref, atol=1e-3, rtol=1e-3)
    assert jnp.allclose(jnp.linalg.norm(metric_out, axis=1), 1.0, atol=1e-4)
    assert jnp.allclose(jnp.linalg.norm(cluster_norm, axis=1), 1.0, atol=1e-4)

    print("KERNEL_OK")
</pallas_src>

<mosaic_0001>
module attributes {stable_mosaic.version = 11 : i64} {
  func.func @dual_fused_kernel(%arg0: i32, %arg1: memref<2x49x4xf32, #tpu.memory_space<vmem>>, %arg2: memref<4x256xf32, #tpu.memory_space<vmem>>, %arg3: memref<1x256xf32, #tpu.memory_space<vmem>>, %arg4: memref<4x32xf32, #tpu.memory_space<vmem>>, %arg5: memref<1x32xf32, #tpu.memory_space<vmem>>, %arg6: memref<32x16xf32, #tpu.memory_space<vmem>>, %arg7: memref<1x16xf32, #tpu.memory_space<vmem>>, %arg8: memref<2x49x256xf32, #tpu.memory_space<vmem>>, %arg9: memref<1x2x128xf32, #tpu.memory_space<vmem>>) attributes {dimension_semantics = [#tpu.dimension_semantics<parallel>], iteration_bounds = array<i64: 4>, scalar_prefetch = 0 : i64, scratch_operands = 0 : i64, tpu.core_type = #tpu.core_type<tc>, window_params = [{pipeline_mode = #tpu.pipeline_mode<synchronous>, transform_indices = @transform_0, window_bounds = array<i64: 2, 49, 4>}, {transform_indices = @transform_1, window_bounds = array<i64: 4, 256>}, {transform_indices = @transform_2, window_bounds = array<i64: 1, 256>}, {pipeline_mode = #tpu.pipeline_mode<synchronous>, transform_indices = @transform_3, window_bounds = array<i64: 4, 32>}, {pipeline_mode = #tpu.pipeline_mode<synchronous>, transform_indices = @transform_4, window_bounds = array<i64: 1, 32>}, {pipeline_mode = #tpu.pipeline_mode<synchronous>, transform_indices = @transform_5, window_bounds = array<i64: 32, 16>}, {pipeline_mode = #tpu.pipeline_mode<synchronous>, transform_indices = @transform_6, window_bounds = array<i64: 1, 16>}, {transform_indices = @transform_7, window_bounds = array<i64: 2, 49, 256>}, {transform_indices = @transform_8, window_bounds = array<i64: 1, 2, 128>}]} {
    %c0 = arith.constant 0 : index
    %c0_0 = arith.constant 0 : index
    %c0_1 = arith.constant 0 : index
    %0 = vector.load %arg1[%c0, %c0_0, %c0_1] : memref<2x49x4xf32, #tpu.memory_space<vmem>>, vector<2x49x4xf32>
    %c0_2 = arith.constant 0 : index
    %c0_3 = arith.constant 0 : index
    %1 = vector.load %arg2[%c0_2, %c0_3] : memref<4x256xf32, #tpu.memory_space<vmem>>, vector<4x256xf32>
    %c0_4 = arith.constant 0 : index
    %c0_5 = arith.constant 0 : index
    %2 = vector.load %arg3[%c0_4, %c0_5] : memref<1x256xf32, #tpu.memory_space<vmem>>, vector<1x256xf32>
    %3 = vector.extract_strided_slice %0 {offsets = [0, 0, 0], sizes = [1, 49, 4], strides = [1, 1, 1]} : vector<2x49x4xf32> to vector<1x49x4xf32>
    %4 = vector.shape_cast %3 : vector<1x49x4xf32> to vector<49x4xf32>
    %cst = arith.constant dense<0.000000e+00> : vector<49x256xf32>
    %5 = tpu.matmul %4, %1, %cst {dimension_numbers = #tpu.dot_dimension_numbers<[1], [0], [0], [1], [0, 0, 1, 1], [], []>} : vector<49x4xf32>, vector<4x256xf32>, vector<49x256xf32> -> vector<49x256xf32>
    %6 = vector.broadcast %2 : vector<1x256xf32> to vector<49x256xf32>
    %7 = arith.addf %5, %6 : vector<49x256xf32>
    %c0_6 = arith.constant 0 : index
    %c0_7 = arith.constant 0 : index
    %c0_8 = arith.constant 0 : index
    %8 = vector.load %arg8[%c0_6, %c0_7, %c0_8] : memref<2x49x256xf32, #tpu.memory_space<vmem>>, vector<1x49x256xf32>
    %9 = vector.shape_cast %8 : vector<1x49x256xf32> to vector<49x256xf32>
    %10 = vector.shape_cast %7 : vector<49x256xf32> to vector<1x49x256xf32>
    tpu.vector_store %arg8[%c0_6, %c0_7, %c0_8], %10 {strides = array<i32>} : memref<2x49x256xf32, #tpu.memory_space<vmem>>, vector<1x49x256xf32>,
    %11 = vector.extract_strided_slice %0 {offsets = [1, 0, 0], sizes = [1, 49, 4], strides = [1, 1, 1]} : vector<2x49x4xf32> to vector<1x49x4xf32>
    %12 = vector.shape_cast %11 : vector<1x49x4xf32> to vector<49x4xf32>
    %cst_9 = arith.constant dense<0.000000e+00> : vector<49x256xf32>
    %13 = tpu.matmul %12, %1, %cst_9 {dimension_numbers = #tpu.dot_dimension_numbers<[1], [0], [0], [1], [0, 0, 1, 1], [], []>} : vector<49x4xf32>, vector<4x256xf32>, vector<49x256xf32> -> vector<49x256xf32>
    %14 = vector.broadcast %2 : vector<1x256xf32> to vector<49x256xf32>
    %15 = arith.addf %13, %14 : vector<49x256xf32>
    %c1 = arith.constant 1 : index
    %c0_10 = arith.constant 0 : index
    %c0_11 = arith.constant 0 : index
    %16 = vector.load %arg8[%c1, %c0_10, %c0_11] : memref<2x49x256xf32, #tpu.memory_space<vmem>>, vector<1x49x256xf32>
    %17 = vector.shape_cast %16 : vector<1x49x256xf32> to vector<49x256xf32>
    %18 = vector.shape_cast %15 : vector<49x256xf32> to vector<1x49x256xf32>
    tpu.vector_store %arg8[%c1, %c0_10, %c0_11], %18 {strides = array<i32>} : memref<2x49x256xf32, #tpu.memory_space<vmem>>, vector<1x49x256xf32>,
    %cst_12 = arith.constant dense<0.000000e+00> : vector<2x4xf32>
    %19 = vector.multi_reduction <add>, %0, %cst_12 [1] : vector<2x49x4xf32> to vector<2x4xf32>
    %cst_13 = arith.constant 4.900000e+01 : f32
    %20 = vector.broadcast %cst_13 : f32 to vector<2x4xf32>
    %21 = arith.divf %19, %20 : vector<2x4xf32>
    %c0_14 = arith.constant 0 : index
    %c0_15 = arith.constant 0 : index
    %22 = vector.load %arg4[%c0_14, %c0_15] : memref<4x32xf32, #tpu.memory_space<vmem>>, vector<4x32xf32>
    %cst_16 = arith.constant dense<0.000000e+00> : vector<2x32xf32>
    %23 = tpu.matmul %21, %22, %cst_16 {dimension_numbers = #tpu.dot_dimension_numbers<[1], [0], [0], [1], [0, 0, 1, 1], [], []>} : vector<2x4xf32>, vector<4x32xf32>, vector<2x32xf32> -> vector<2x32xf32>
    %c0_17 = arith.constant 0 : index
    %c0_18 = arith.constant 0 : index
    %24 = vector.load %arg5[%c0_17, %c0_18] : memref<1x32xf32, #tpu.memory_space<vmem>>, vector<1x32xf32>
    %25 = vector.broadcast %24 : vector<1x32xf32> to vector<2x32xf32>
    %26 = arith.addf %23, %25 : vector<2x32xf32>
    %27 = arith.mulf %26, %26 : vector<2x32xf32>
    %cst_19 = arith.constant dense<0.000000e+00> : vector<2xf32>
    %28 = vector.multi_reduction <add>, %27, %cst_19 [1] : vector<2x32xf32> to vector<2xf32>
    %29 = vector.shape_cast %28 : vector<2xf32> to vector<2x1xf32>
    %cst_20 = arith.constant 1.000000e-24 : f32
    %30 = vector.broadcast %cst_20 : f32 to vector<2x1xf32>
    %31 = arith.maximumf %29, %30 : vector<2x1xf32>
    %32 = math.rsqrt %31 : vector<2x1xf32>
    %33 = vector.broadcast %32 : vector<2x1xf32> to vector<2x32xf32>
    %34 = arith.mulf %26, %33 : vector<2x32xf32>
    %c0_21 = arith.constant 0 : index
    %c0_22 = arith.constant 0 : index
    %35 = vector.load %arg6[%c0_21, %c0_22] : memref<32x16xf32, #tpu.memory_space<vmem>>, vector<32x16xf32>
    %cst_23 = arith.constant dense<0.000000e+00> : vector<2x16xf32>
    %36 = tpu.matmul %34, %35, %cst_23 {dimension_numbers = #tpu.dot_dimension_numbers<[1], [0], [0], [1], [0, 0, 1, 1], [], []>} : vector<2x32xf32>, vector<32x16xf32>, vector<2x16xf32> -> vector<2x16xf32>
    %c0_24 = arith.constant 0 : index
    %c0_25 = arith.constant 0 : index
    %37 = vector.load %arg7[%c0_24, %c0_25] : memref<1x16xf32, #tpu.memory_space<vmem>>, vector<1x16xf32>
    %38 = vector.broadcast %37 : vector<1x16xf32> to vector<2x16xf32>
    %39 = arith.addf %36, %38 : vector<2x16xf32>
    %40 = arith.mulf %39, %39 : vector<2x16xf32>
    %cst_26 = arith.constant dense<0.000000e+00> : vector<2xf32>
    %41 = vector.multi_reduction <add>, %40, %cst_26 [1] : vector<2x16xf32> to vector<2xf32>
    %42 = vector.shape_cast %41 : vector<2xf32> to vector<2x1xf32>
    %cst_27 = arith.constant 1.000000e-24 : f32
    %43 = vector.broadcast %cst_27 : f32 to vector<2x1xf32>
    %44 = arith.maximumf %42, %43 : vector<2x1xf32>
    %45 = math.rsqrt %44 : vector<2x1xf32>
    %46 = vector.broadcast %45 : vector<2x1xf32> to vector<2x16xf32>
    %47 = arith.mulf %39, %46 : vector<2x16xf32>
    %cst_28 = arith.constant 0.000000e+00 : f32
    %48 = vector.broadcast %cst_28 : f32 to vector<1x2x128xf32>
    %c0_29 = arith.constant 0 : index
    %c0_30 = arith.constant 0 : index
    %c0_31 = arith.constant 0 : index
    %49 = vector.load %arg9[%c0_29, %c0_30, %c0_31] : memref<1x2x128xf32, #tpu.memory_space<vmem>>, vector<1x2x128xf32>
    tpu.vector_store %arg9[%c0_29, %c0_30, %c0_31], %48 {strides = array<i32>} : memref<1x2x128xf32, #tpu.memory_space<vmem>>, vector<1x2x128xf32>,
    %c0_32 = arith.constant 0 : index
    %c0_33 = arith.constant 0 : index
    %c0_34 = arith.constant 0 : index
    %50 = vector.load %arg9[%c0_32, %c0_33, %c0_34] : memref<1x2x128xf32, #tpu.memory_space<vmem>>, vector<1x2x32xf32>
    %51 = vector.shape_cast %50 : vector<1x2x32xf32> to vector<2x32xf32>
    %52 = vector.shape_cast %34 : vector<2x32xf32> to vector<1x2x32xf32>
    tpu.vector_store %arg9[%c0_32, %c0_33, %c0_34], %52 {strides = array<i32>} : memref<1x2x128xf32, #tpu.memory_space<vmem>>, vector<1x2x32xf32>,
    %c0_35 = arith.constant 0 : index
    %c0_36 = arith.constant 0 : index
    %c32 = arith.constant 32 : index
    %53 = vector.load %arg9[%c0_35, %c0_36, %c32] : memref<1x2x128xf32, #tpu.memory_space<vmem>>, vector<1x2x16xf32>
    %54 = vector.shape_cast %53 : vector<1x2x16xf32> to vector<2x16xf32>
    %55 = vector.shape_cast %47 : vector<2x16xf32> to vector<1x2x16xf32>
    tpu.vector_store %arg9[%c0_35, %c0_36, %c32], %55 {strides = array<i32>} : memref<1x2x128xf32, #tpu.memory_space<vmem>>, vector<1x2x16xf32>,
    return
  }
  func.func @transform_0(%arg0: i32) -> (i32, i32, i32) {
    %c0_i32 = arith.constant 0 : i32
    %c0_i32_0 = arith.constant 0 : i32
    %c0_i32_1 = arith.constant 0 : i32
    %c0_i32_2 = arith.constant 0 : i32
    return %c0_i32, %c0_i32_0, %c0_i32_1 : i32, i32, i32
  }
  func.func @transform_1(%arg0: i32) -> (i32, i32) {
    %c0_i32 = arith.constant 0 : i32
    %c0_i32_0 = arith.constant 0 : i32
    return %c0_i32, %arg0 : i32, i32
  }
  func.func @transform_2(%arg0: i32) -> (i32, i32) {
    %c0_i32 = arith.constant 0 : i32
    %c0_i32_0 = arith.constant 0 : i32
    return %c0_i32, %arg0 : i32, i32
  }
  func.func @transform_3(%arg0: i32) -> (i32, i32) {
    %c0_i32 = arith.constant 0 : i32
    %c0_i32_0 = arith.constant 0 : i32
    %c0_i32_1 = arith.constant 0 : i32
    return %c0_i32, %c0_i32_0 : i32, i32
  }
  func.func @transform_4(%arg0: i32) -> (i32, i32) {
    %c0_i32 = arith.constant 0 : i32
    %c0_i32_0 = arith.constant 0 : i32
    %c0_i32_1 = arith.constant 0 : i32
    return %c0_i32, %c0_i32_0 : i32, i32
  }
  func.func @transform_5(%arg0: i32) -> (i32, i32) {
    %c0_i32 = arith.constant 0 : i32
    %c0_i32_0 = arith.constant 0 : i32
    %c0_i32_1 = arith.constant 0 : i32
    return %c0_i32, %c0_i32_0 : i32, i32
  }
  func.func @transform_6(%arg0: i32) -> (i32, i32) {
    %c0_i32 = arith.constant 0 : i32
    %c0_i32_0 = arith.constant 0 : i32
    %c0_i32_1 = arith.constant 0 : i32
    return %c0_i32, %c0_i32_0 : i32, i32
  }
  func.func @transform_7(%arg0: i32) -> (i32, i32, i32) {
    %c0_i32 = arith.constant 0 : i32
    %c0_i32_0 = arith.constant 0 : i32
    %c0_i32_1 = arith.constant 0 : i32
    return %c0_i32, %c0_i32_0, %arg0 : i32, i32, i32
  }
  func.func @transform_8(%arg0: i32) -> (i32, i32, i32) {
    %c0_i32 = arith.constant 0 : i32
    %c0_i32_0 = arith.constant 0 : i32
    %c0_i32_1 = arith.constant 0 : i32
    return %arg0, %c0_i32, %c0_i32_0 : i32, i32, i32
  }
}

</mosaic_0001>

<llo_original>
// kernel: tpu_custom_call.1
$region0: #{tpu_custom_call.1}
  #allocation0 [shape = 'u32[]', space=smem, size = 0x4, offset = 0x4, fixed_abs, tag = 'smem constant byte address 0x4 - core index']
  #allocation1 [shape = 'u32[144,128]{1,0:T(1,128)}', space=vmem, size = 0x12000, scoped, tag = 'internal scratch']
  %s0 = inlined_call_operand.vmem [shape: f32[2,49,4], index: 0, kind: input, shape index: {}]
  %s1 = inlined_call_operand.vmem [shape: f32[4,1024], index: 1, kind: input, shape index: {}]
  %s2 = inlined_call_operand.vmem [shape: f32[1,1024], index: 2, kind: input, shape index: {}]
  %s3 = inlined_call_operand.vmem [shape: f32[4,32], index: 3, kind: input, shape index: {}]
  %s4 = inlined_call_operand.vmem [shape: f32[1,32], index: 4, kind: input, shape index: {}]
  %s5 = inlined_call_operand.vmem [shape: f32[32,16], index: 5, kind: input, shape index: {}]
  %s6 = inlined_call_operand.vmem [shape: f32[1,16], index: 6, kind: input, shape index: {}]
  %s7 = inlined_call_operand.vmem [shape: f32[2,49,1024], index: 7, kind: output, shape index: {0}]
  %s8 = inlined_call_operand.hbm [shape: f32[4,2,128], index: 8, kind: output, shape index: {1}]
  %9 = xla_tuple %s7, %s8
  %s10 = sld [smem:[#allocation0]]
  $region88: #{tpu_custom_call.1} parent=0
    _
  %s12 = ssub.s32 1, %s10
  %s13 = scalar_select 0, %s12, %s10
  $region1: #{tpu_custom_call.1} parent=0
    #allocation2 [shape = 'u8[229376]{0}', space=vmem, size = 0x38000, scoped, tag = 'output window, operand 0']
    #allocation3 [shape = 'u8[2048]{0}', space=vmem, size = 0x800, scoped, tag = 'output window, operand 1']
    #allocation4 [shape = 's32[2]{0}', space=sflag, size = 0x8, scoped, tag = 'scoped memory for tpu_custom_call.1']
    %14 = vsyncpa [#allocation4], 0
    %s15 = scalar_lea.sflag [#allocation4], 1
    %16 = vsyncpa %s15, 0
    loop: start=0, step=1, limit=6
    $region2: #{tpu_custom_call.1} parent=1 // loop_pre_header
      _
    $region3: #{tpu_custom_call.1} parent=1 // loop_header
      %s18 = sphi 0, %s22
      %p19 = scmp.ge.s32.totalorder %s18, 6
      %s26 = sphi 0, %s26
      %s28 = sphi 0, %s26
      %s29 = sphi 0, %s28
      %s43 = sphi 0, %s29
      %s49 = sphi 0, %s51
      %s52 = sphi 0, %s49
      %s53 = sphi 0, %s52
      %s69 = sphi 0, %s53
      %s75 = sphi 0, %s77
      %s78 = sphi 0, %s75
      %s79 = sphi 0, %s78
      %s95 = sphi 0, %s79
      %s99 = sphi 0, %s99
      %s101 = sphi 0, %s99
      %s102 = sphi 0, %s101
      %s116 = sphi 0, %s102
      %s120 = sphi 0, %s120
      %s122 = sphi 0, %s120
      %s123 = sphi 0, %s122
      %s137 = sphi 0, %s123
      %s141 = sphi 0, %s141
      %s143 = sphi 0, %s141
      %s144 = sphi 0, %s143
      %s158 = sphi 0, %s144
      %s162 = sphi 0, %s162
      %s164 = sphi 0, %s162
      %s165 = sphi 0, %s164
      %s179 = sphi 0, %s165
      %s185 = sphi 0, %s187
      %s188 = sphi 0, %s185
      %s189 = sphi 0, %s188
      %s205 = sphi 0, %s189
      %s211 = sphi 0, %s213
      %s214 = sphi 0, %s211
      %s215 = sphi 0, %s214
      %s231 = sphi 0, %s215
    $region4: #{tpu_custom_call.1} parent=1 // loop_header_branch
      %21 = sbr.rel (%p19) target = $region8
    $region5: #{tpu_custom_call.1} parent=1 // loop_body
      %s23 = ssub.s32 %s18, 1
      %s24 = ssub.s32 %s18, 2
      %s25 = sadd.s32 %s18, 1
      %s27 = sadd.s32 %s26, 1
      %p30 = scmp.eq.s32.totalorder %s18, 3
      %p31 = scmp.ne.s32.totalorder %s26, %s28
      %p32 = scmp.eq.s32.totalorder %s18, 0
      %p33 = por %p31, %p32
      %p34 = scmp.ne.s32.totalorder %s26, %s28
      %p35 = scmp.eq.s32.totalorder %s23, 3
      %p36 = por %p34, %p35
      %p37 = scmp.ne.s32.totalorder %s28, %s29
      %p38 = scmp.eq.s32.totalorder %s23, 0
      %p39 = por %p37, %p38
      %p40 = scmp.ne.s32.totalorder %s28, %s29
      %p41 = scmp.eq.s32.totalorder %s24, 3
      %p42 = por %p40, %p41
      %p44 = scmp.ne.s32.totalorder %s29, %s43
      %p45 = scmp.eq.s32.totalorder %s24, 0
      %p46 = por %p44, %p45
      %s47 = ssub.s32 %s18, %s25
      %p48 = scmp.eq.s32.totalorder %s47, 0
      %s50 = sadd.s32 %s49, 1
      %s51 = scalar_select %p48, %s49, %s50
      %p54 = pneg %p48
      %p55 = scmp.eq.s32.totalorder %s18, 3
      %p56 = por %p54, %p55
      %p57 = scmp.ne.s32.totalorder %s49, %s52
      %p58 = scmp.eq.s32.totalorder %s18, 0
      %p59 = por %p57, %p58
      %p60 = scmp.ne.s32.totalorder %s49, %s52
      %p61 = scmp.eq.s32.totalorder %s23, 3
      %p62 = por %p60, %p61
      %p63 = scmp.ne.s32.totalorder %s52, %s53
      %p64 = scmp.eq.s32.totalorder %s23, 0
      %p65 = por %p63, %p64
      %p66 = scmp.ne.s32.totalorder %s52, %s53
      %p67 = scmp.eq.s32.totalorder %s24, 3
      %p68 = por %p66, %p67
      %p70 = scmp.ne.s32.totalorder %s53, %s69
      %p71 = scmp.eq.s32.totalorder %s24, 0
      %p72 = por %p70, %p71
      %s73 = ssub.s32 %s18, %s25
      %p74 = scmp.eq.s32.totalorder %s73, 0
      %s76 = sadd.s32 %s75, 1
      %s77 = scalar_select %p74, %s75, %s76
      %p80 = pneg %p74
      %p81 = scmp.eq.s32.totalorder %s18, 3
      %p82 = por %p80, %p81
      %p83 = scmp.ne.s32.totalorder %s75, %s78
      %p84 = scmp.eq.s32.totalorder %s18, 0
      %p85 = por %p83, %p84
      %p86 = scmp.ne.s32.totalorder %s75, %s78
      %p87 = scmp.eq.s32.totalorder %s23, 3
      %p88 = por %p86, %p87
      %p89 = scmp.ne.s32.totalorder %s78, %s79
      %p90 = scmp.eq.s32.totalorder %s23, 0
      %p91 = por %p89, %p90
      %p92 = scmp.ne.s32.totalorder %s78, %s79
      %p93 = scmp.eq.s32.totalorder %s24, 3
      %p94 = por %p92, %p93
      %p96 = scmp.ne.s32.totalorder %s79, %s95
      %p97 = scmp.eq.s32.totalorder %s24, 0
      %p98 = por %p96, %p97
      %s100 = sadd.s32 %s99, 1
      %p103 = scmp.eq.s32.totalorder %s18, 3
      %p104 = scmp.ne.s32.totalorder %s99, %s101
      %p105 = scmp.eq.s32.totalorder %s18, 0
      %p106 = por %p104, %p105
      %p107 = scmp.ne.s32.totalorder %s99, %s101
      %p108 = scmp.eq.s32.totalorder %s23, 3
      %p109 = por %p107, %p108
      %p110 = scmp.ne.s32.totalorder %s101, %s102
      %p111 = scmp.eq.s32.totalorder %s23, 0
      %p112 = por %p110, %p111
      %p113 = scmp.ne.s32.totalorder %s101, %s102
      %p114 = scmp.eq.s32.totalorder %s24, 3
      %p115 = por %p113, %p114
      %p117 = scmp.ne.s32.totalorder %s102, %s116
      %p118 = scmp.eq.s32.totalorder %s24, 0
      %p119 = por %p117, %p118
      %s121 = sadd.s32 %s120, 1
      %p124 = scmp.eq.s32.totalorder %s18, 3
      %p125 = scmp.ne.s32.totalorder %s120, %s122
      %p126 = scmp.eq.s32.totalorder %s18, 0
      %p127 = por %p125, %p126
      %p128 = scmp.ne.s32.totalorder %s120, %s122
      %p129 = scmp.eq.s32.totalorder %s23, 3
      %p130 = por %p128, %p129
      %p131 = scmp.ne.s32.totalorder %s122, %s123
      %p132 = scmp.eq.s32.totalorder %s23, 0
      %p133 = por %p131, %p132
      %p134 = scmp.ne.s32.totalorder %s122, %s123
      %p135 = scmp.eq.s32.totalorder %s24, 3
      %p136 = por %p134, %p135
      %p138 = scmp.ne.s32.totalorder %s123, %s137
      %p139 = scmp.eq.s32.totalorder %s24, 0
      %p140 = por %p138, %p139
      %s142 = sadd.s32 %s141, 1
      %p145 = scmp.eq.s32.totalorder %s18, 3
      %p146 = scmp.ne.s32.totalorder %s141, %s143
      %p147 = scmp.eq.s32.totalorder %s18, 0
      %p148 = por %p146, %p147
      %p149 = scmp.ne.s32.totalorder %s141, %s143
      %p150 = scmp.eq.s32.totalorder %s23, 3
      %p151 = por %p149, %p150
      %p152 = scmp.ne.s32.totalorder %s143, %s144
      %p153 = scmp.eq.s32.totalorder %s23, 0
      %p154 = por %p152, %p153
      %p155 = scmp.ne.s32.totalorder %s143, %s144
      %p156 = scmp.eq.s32.totalorder %s24, 3
      %p157 = por %p155, %p156
      %p159 = scmp.ne.s32.totalorder %s144, %s158
      %p160 = scmp.eq.s32.totalorder %s24, 0
      %p161 = por %p159, %p160
      %s163 = sadd.s32 %s162, 1
      %p166 = scmp.eq.s32.totalorder %s18, 3
      %p167 = scmp.ne.s32.totalorder %s162, %s164
      %p168 = scmp.eq.s32.totalorder %s18, 0
      %p169 = por %p167, %p168
      %p170 = scmp.ne.s32.totalorder %s162, %s164
      %p171 = scmp.eq.s32.totalorder %s23, 3
      %p172 = por %p170, %p171
      %p173 = scmp.ne.s32.totalorder %s164, %s165
      %p174 = scmp.eq.s32.totalorder %s23, 0
      %p175 = por %p173, %p174
      %p176 = scmp.ne.s32.totalorder %s164, %s165
      %p177 = scmp.eq.s32.totalorder %s24, 3
      %p178 = por %p176, %p177
      %p180 = scmp.ne.s32.totalorder %s165, %s179
      %p181 = scmp.eq.s32.totalorder %s24, 0
      %p182 = por %p180, %p181
      %s183 = ssub.s32 %s18, %s25
      %p184 = scmp.eq.s32.totalorder %s183, 0
      %s186 = sadd.s32 %s185, 1
      %s187 = scalar_select %p184, %s185, %s186
      %p190 = pneg %p184
      %p191 = scmp.eq.s32.totalorder %s18, 3
      %p192 = por %p190, %p191
      %p193 = scmp.ne.s32.totalorder %s185, %s188
      %p194 = scmp.eq.s32.totalorder %s18, 0
      %p195 = por %p193, %p194
      %p196 = scmp.ne.s32.totalorder %s185, %s188
      %p197 = scmp.eq.s32.totalorder %s23, 3
      %p198 = por %p196, %p197
      %p199 = scmp.ne.s32.totalorder %s188, %s189
      %p200 = scmp.eq.s32.totalorder %s23, 0
      %p201 = por %p199, %p200
      %p202 = scmp.ne.s32.totalorder %s188, %s189
      %p203 = scmp.eq.s32.totalorder %s24, 3
      %p204 = por %p202, %p203
      %p206 = scmp.ne.s32.totalorder %s189, %s205
      %p207 = scmp.eq.s32.totalorder %s24, 0
      %p208 = por %p206, %p207
      %s209 = ssub.s32 %s18, %s25
      %p210 = scmp.eq.s32.totalorder %s209, 0
      %s212 = sadd.s32 %s211, 1
      %s213 = scalar_select %p210, %s211, %s212
      %p216 = pneg %p210
      %p217 = scmp.eq.s32.totalorder %s18, 3
      %p218 = por %p216, %p217
      %p219 = scmp.ne.s32.totalorder %s211, %s214
      %p220 = scmp.eq.s32.totalorder %s18, 0
      %p221 = por %p219, %p220
      %p222 = scmp.ne.s32.totalorder %s211, %s214
      %p223 = scmp.eq.s32.totalorder %s23, 3
      %p224 = por %p222, %p223
      %p225 = scmp.ne.s32.totalorder %s214, %s215
      %p226 = scmp.eq.s32.totalorder %s23, 0
      %p227 = por %p225, %p226
      %p228 = scmp.ne.s32.totalorder %s214, %s215
      %p229 = scmp.eq.s32.totalorder %s24, 3
      %p230 = por %p228, %p229
      %p232 = scmp.ne.s32.totalorder %s215, %s231
      %p233 = scmp.eq.s32.totalorder %s24, 0
      %p234 = por %p232, %p233
      %p235 = scmp.le.s32.totalorder 1, %s18
      %p236 = scmp.lt.s32.totalorder %s18, 5
      %p237 = pnand %p235, %p236
      %p238 = pneg %p237
      // Predicated region
      $region9: #{tpu_custom_call.1} parent=5 // pred_check
        _
      $region10: #{tpu_custom_call.1} parent=5 // pred_check_branch
        %240 = sbr.rel (%p237) target = $region12
      $region11: #{tpu_custom_call.1} parent=5 // pred_region
        %s241 = ssub.s32 %s18, 1
        // Predicated region
        $region13: #{tpu_custom_call.1} parent=11 // pred_check
          %p242 = pneg %p39
        $region14: #{tpu_custom_call.1} parent=11 // pred_check_branch
          %244 = sbr.rel (%p242) target = $region16
        $region15: #{tpu_custom_call.1} parent=11 // pred_region
          _
        $region16: #{tpu_custom_call.1} parent=11 // pred_fallthru
          _
        // Predicated region
        $region17: #{tpu_custom_call.1} parent=11 // pred_check
          %p245 = pneg %p112
        $region18: #{tpu_custom_call.1} parent=11 // pred_check_branch
          %247 = sbr.rel (%p245) target = $region20
        $region19: #{tpu_custom_call.1} parent=11 // pred_region
          _
        $region20: #{tpu_custom_call.1} parent=11 // pred_fallthru
          _
        // Predicated region
        $region21: #{tpu_custom_call.1} parent=11 // pred_check
          %p248 = pneg %p133
        $region22: #{tpu_custom_call.1} parent=11 // pred_check_branch
          %250 = sbr.rel (%p248) target = $region24
        $region23: #{tpu_custom_call.1} parent=11 // pred_region
          _
        $region24: #{tpu_custom_call.1} parent=11 // pred_fallthru
          _
        // Predicated region
        $region25: #{tpu_custom_call.1} parent=11 // pred_check
          %p251 = pneg %p154
        $region26: #{tpu_custom_call.1} parent=11 // pred_check_branch
          %253 = sbr.rel (%p251) target = $region28
        $region27: #{tpu_custom_call.1} parent=11 // pred_region
          _
        $region28: #{tpu_custom_call.1} parent=11 // pred_fallthru
          _
        // Predicated region
        $region29: #{tpu_custom_call.1} parent=11 // pred_check
          %p254 = pneg %p175
        $region30: #{tpu_custom_call.1} parent=11 // pred_check_branch
          %256 = sbr.rel (%p254) target = $region32
        $region31: #{tpu_custom_call.1} parent=11 // pred_region
          _
        $region32: #{tpu_custom_call.1} parent=11 // pred_fallthru
          _
      $region12: #{tpu_custom_call.1} parent=5 // pred_fallthru
        _
      %p257 = scmp.lt.s32.totalorder %s18, 4
      // Predicated region
      $region33: #{tpu_custom_call.1} parent=5 // pred_check
        %p258 = pneg %p257
      $region34: #{tpu_custom_call.1} parent=5 // pred_check_branch
        %260 = sbr.rel (%p258) target = $region36
      $region35: #{tpu_custom_call.1} parent=5 // pred_region
        // Predicated region
        $region37: #{tpu_custom_call.1} parent=35 // pred_check
          %p261 = pneg %p59
        $region38: #{tpu_custom_call.1} parent=35 // pred_check_branch
          %263 = sbr.rel (%p261) target = $region40
        $region39: #{tpu_custom_call.1} parent=35 // pred_region
          %s264 = smul.u32 2, %s18
          %p265 = scmp.lt.s32.totalorder %s264, 7
          %s266 = scalar_select %p265, %s264, 7
          %s267 = smul.addr %s266, 4
          %s268 = scalar_lea.vmem %s1, %s267
          %s269 = smul.u32 2, %s18
        $region40: #{tpu_custom_call.1} parent=35 // pred_fallthru
          _
        // Predicated region
        $region41: #{tpu_custom_call.1} parent=35 // pred_check
          %p270 = pneg %p85
        $region42: #{tpu_custom_call.1} parent=35 // pred_check_branch
          %272 = sbr.rel (%p270) target = $region44
        $region43: #{tpu_custom_call.1} parent=35 // pred_region
          %s273 = smul.u32 2, %s18
          %p274 = scmp.lt.s32.totalorder %s273, 7
          %s275 = scalar_select %p274, %s273, 7
          %s276 = scalar_lea.vmem %s2, %s275
          %s277 = smul.u32 2, %s18
        $region44: #{tpu_custom_call.1} parent=35 // pred_fallthru
          _
      $region36: #{tpu_custom_call.1} parent=5 // pred_fallthru
        _
      %p278 = scmp.le.s32.totalorder 1, %s18
      %p279 = scmp.lt.s32.totalorder %s18, 5
      %p280 = pnand %p278, %p279
      %p281 = pneg %p280
      // Predicated region
      $region45: #{tpu_custom_call.1} parent=5 // pred_check
        _
      $region46: #{tpu_custom_call.1} parent=5 // pred_check_branch
        %283 = sbr.rel (%p280) target = $region48
      $region47: #{tpu_custom_call.1} parent=5 // pred_region
        %s284 = ssub.s32 %s18, 1
        %p285 = pneg %p39
        %p286 = pneg %p36
        %s287 = smul.u32 2, %s23
        %p288 = scmp.lt.s32.totalorder %s287, 7
        %s289 = scalar_select %p288, %s287, 7
        %s290 = smul.addr %s289, 4
        %s291 = scalar_lea.vmem %s1, %s290
        %p292 = pneg %p65
        %p293 = pneg %p62
        %s294 = smul.u32 2, %s23
        %p295 = scmp.lt.s32.totalorder %s294, 7
        %s296 = scalar_select %p295, %s294, 7
        %s297 = scalar_lea.vmem %s2, %s296
        %p298 = pneg %p91
        %p299 = pneg %p88
        %p300 = pneg %p112
        %p301 = pneg %p109
        %p302 = pneg %p133
        %p303 = pneg %p130
        %p304 = pneg %p154
        %p305 = pneg %p151
        %p306 = pneg %p175
        %p307 = pneg %p172
        %p308 = pneg %p201
        %p309 = pneg %p198
        %s310 = sand.u32 %s188, 1
        %s311 = sand.u32 %s188, 1
        %s312 = smul.addr %s311, 224
        %s313 = scalar_lea.vmem [#allocation2], %s312
        %p314 = pneg %p227
        %p315 = pneg %p224
        %s316 = sand.u32 %s214, 1
        %s317 = scalar_lea.sflag [#allocation4], %s316
        %s318 = sand.u32 %s214, 1
        %s319 = smul.addr %s318, 2
        %s320 = scalar_lea.vmem [#allocation3], %s319
        %s321 = smul.u32 2, %s23
        %p322 = scmp.lt.s32.totalorder %s321, 7
        %s323 = scalar_select %p322, %s321, 7
        %s324 = smul.addr %s323, 4
        %s325 = scalar_lea.vmem %s1, %s324
        %s326 = smul.u32 2, %s23
        %s327 = smul.u32 2, %s23
        %p328 = scmp.lt.s32.totalorder %s327, 7
        %s329 = scalar_select %p328, %s327, 7
        %s330 = scalar_lea.vmem %s2, %s329
        %s331 = smul.u32 2, %s23
        %s332 = smul.u32 2, %s23
        %v333 = vld [vmem:[%s0] sm:$0xff]
        %v334 = vld [vmem:[%s0 + $0x8] sm:$0xff]
        %v335 = vld [vmem:[%s0 + $0x10] sm:$0xff]
        %v336 = vld [vmem:[%s0 + $0x18] sm:$0xff]
        %v337 = vld [vmem:[%s0 + $0x20] sm:$0xff]
        %v338 = vld [vmem:[%s0 + $0x28] sm:$0xff]
        %v339 = vld [vmem:[%s0 + $0x30] sm:$0x1]
        %v340 = vld [vmem:[%s0 + $0x38] sm:$0xff]
        %v341 = vld [vmem:[%s0 + $0x40] sm:$0xff]
        %v342 = vld [vmem:[%s0 + $0x48] sm:$0xff]
        %v343 = vld [vmem:[%s0 + $0x50] sm:$0xff]
        %v344 = vld [vmem:[%s0 + $0x58] sm:$0xff]
        %v345 = vld [vmem:[%s0 + $0x60] sm:$0xff]
        %v346 = vld [vmem:[%s0 + $0x68] sm:$0x1]
        %v347 = vld [vmem:[%s325] sm:$0xff]
        %v348 = vld [vmem:[%s330] sm:$0x3]
        %v350 = vlaneseq
        %v351 = vshrl.u32 %v350, 7
        %v352 = vsub.s32 0, %v351
        %v353 = vrot.slane %v348, %v352
        %v354 = vlaneseq
        %v355 = vshrl.u32 %v354, 7
        %v356 = vsub.s32 1, %v355
        %v357 = vrot.slane %v348, %v356
        %v361 = vcombine.high %v347, %v347
        %vm362 = vcmask 31744
        %v364 = vsel %vm362, %v333, 0
        %v367 = vsel %vm362, %v334, 0
        %v370 = vsel %vm362, %v335, 0
        %v373 = vsel %vm362, %v336, 0
        %v376 = vsel %vm362, %v337, 0
        %v379 = vsel %vm362, %v338, 0
        %v382 = vsel %vm362, %v339, 0
        %vm384 = vcmask 1043456
        %v385 = vsel %vm384, %v347, 0
        %v387 = vsel %vm384, %v361, 0
        %389 = vmatprep.subr.mxu0 0.0
        %390 = vmatpush1.msra.mxu0 0.0
        %391 = vmatprep.subr.mxu0 0.0
        %392 = vmatpush1.msra.mxu0 0.0
        %393 = vmatprep.subr.mxu0 0.0
        %394 = vmatpush1.msra.mxu0 0.0
        %395 = vmatprep.subr.mxu0 0.0
        %396 = vmatpush1.msra.mxu0 0.0
        %397 = vmatprep.subr.mxu0 0.0
        %398 = vmatpush1.msra.mxu0 0.0
        %399 = vmatprep.subr.mxu0 0.0
        %400 = vmatpush1.msra.mxu0 0.0
        %401 = vmatprep.subr.mxu0 0.0
        %402 = vmatpush1.msra.mxu0 0.0
        %403 = vmatprep.subr.mxu0 0.0
        %404 = vmatpush1.msra.mxu0 0.0
        %405 = vmatprep.subr.mxu0 0.0
        %406 = vmatpush1.msra.mxu0 0.0
        %407 = vmatprep.subr.mxu0 0.0
        %408 = vmatpush1.msra.mxu0 0.0
        %409 = vmatprep.subr.mxu0 0.0
        %410 = vmatpush1.msra.mxu0 0.0
        %411 = vmatprep.subr.mxu0 0.0
        %412 = vmatpush1.msra.mxu0 0.0
        %413 = vmatprep.subr.mxu0 0.0
        %414 = vmatpush1.msra.mxu0 0.0
        %415 = vmatprep.subr.mxu0 0.0
        %416 = vmatpush1.msra.mxu0 0.0
        %417 = vmatprep.subr.mxu0 0.0
        %418 = vmatpush1.msra.mxu0 0.0
        %419 = vmatprep.subr.mxu0 %v387
        %420 = vmatpush1.msra.mxu0 %v385
        %421 = vmatprep.subr.mxu0 0.0
        %422 = vmatpush2.msra.mxu0 0.0
        %423 = vmatprep.subr.mxu0 0.0
        %424 = vmatpush2.msra.mxu0 0.0
        %425 = vmatprep.subr.mxu0 0.0
        %426 = vmatpush2.msra.mxu0 0.0
        %427 = vmatprep.subr.mxu0 0.0
        %428 = vmatpush2.msra.mxu0 0.0
        %429 = vmatprep.subr.mxu0 0.0
        %430 = vmatpush2.msra.mxu0 0.0
        %431 = vmatprep.subr.mxu0 0.0
        %432 = vmatpush2.msra.mxu0 0.0
        %433 = vmatprep.subr.mxu0 0.0
        %434 = vmatpush2.msra.mxu0 0.0
        %435 = vmatprep.subr.mxu0 0.0
        %436 = vmatpush2.msra.mxu0 0.0
        %437 = vmatprep.subr.mxu0 0.0
        %438 = vmatpush2.msra.mxu0 0.0
        %439 = vmatprep.subr.mxu0 0.0
        %440 = vmatpush2.msra.mxu0 0.0
        %441 = vmatprep.subr.mxu0 0.0
        %442 = vmatpush2.msra.mxu0 0.0
        %443 = vmatprep.subr.mxu0 0.0
        %444 = vmatpush2.msra.mxu0 0.0
        %445 = vmatprep.subr.mxu0 0.0
        %446 = vmatpush2.msra.mxu0 0.0
        %447 = vmatprep.subr.mxu0 0.0
        %448 = vmatpush2.msra.mxu0 0.0
        %449 = vmatprep.subr.mxu0 0.0
        %450 = vmatpush2.msra.mxu0 0.0
        %451 = vmatprep.subr.mxu0 0.0
        %452 = vmatpush2.msra.mxu0 0.0
        %453 = vmatprep.mubr.f32.mxu0 0.0
        %454 = vmatmul.mubr.f32.gmra.mxu0 %v364
        %v455 = vpop.f32.mrf.mxu0
        %v456 = vadd.f32 %v353, %v455
        %v457 = vpop.f32.mrf.mxu0
        %v458 = vadd.f32 %v357, %v457
        %459 = vmatprep.mubr.f32.mxu0 0.0
        %460 = vmatmul.mubr.f32.gmra.mxu0 %v367
        %v461 = vpop.f32.mrf.mxu0
        %v462 = vadd.f32 %v353, %v461
        %v463 = vpop.f32.mrf.mxu0
        %v464 = vadd.f32 %v357, %v463
        %465 = vmatprep.mubr.f32.mxu0 0.0
        %466 = vmatmul.mubr.f32.gmra.mxu0 %v370
        %v467 = vpop.f32.mrf.mxu0
        %v468 = vadd.f32 %v353, %v467
        %v469 = vpop.f32.mrf.mxu0
        %v470 = vadd.f32 %v357, %v469
        %471 = vmatprep.mubr.f32.mxu0 0.0
        %472 = vmatmul.mubr.f32.gmra.mxu0 %v373
        %v473 = vpop.f32.mrf.mxu0
        %v474 = vadd.f32 %v353, %v473
        %v475 = vpop.f32.mrf.mxu0
        %v476 = vadd.f32 %v357, %v475
        %477 = vmatprep.mubr.f32.mxu0 0.0
        %478 = vmatmul.mubr.f32.gmra.mxu0 %v376
        %v479 = vpop.f32.mrf.mxu0
        %v480 = vadd.f32 %v353, %v479
        %v481 = vpop.f32.mrf.mxu0
        %v482 = vadd.f32 %v357, %v481
        %483 = vmatprep.mubr.f32.mxu0 0.0
        %484 = vmatmul.mubr.f32.gmra.mxu0 %v379
        %v485 = vpop.f32.mrf.mxu0
        %v486 = vadd.f32 %v353, %v485
        %v487 = vpop.f32.mrf.mxu0
        %v488 = vadd.f32 %v357, %v487
        %489 = vmatprep.mubr.f32.mxu0 0.0
        %490 = vmatmul.mubr.f32.gmra.mxu0 %v382
        %v491 = vpop.f32.mrf.mxu0
        %v492 = vadd.f32 %v353, %v491
        %v493 = vpop.f32.mrf.mxu0
        %v494 = vadd.f32 %v357, %v493
        %495 = vdwg.mxu0
        %496 = vst [vmem:[%s313] sm:$0xff] %v456
        %497 = vst [vmem:[%s313 + $0x8] sm:$0xff] %v458
        %498 = vst [vmem:[%s313 + $0x10] sm:$0xff] %v462
        %499 = vst [vmem:[%s313 + $0x18] sm:$0xff] %v464
        %500 = vst [vmem:[%s313 + $0x20] sm:$0xff] %v468
        %501 = vst [vmem:[%s313 + $0x28] sm:$0xff] %v470
        %502 = vst [vmem:[%s313 + $0x30] sm:$0xff] %v474
        %503 = vst [vmem:[%s313 + $0x38] sm:$0xff] %v476
        %504 = vst [vmem:[%s313 + $0x40] sm:$0xff] %v480
        %505 = vst [vmem:[%s313 + $0x48] sm:$0xff] %v482
        %506 = vst [vmem:[%s313 + $0x50] sm:$0xff] %v486
        %507 = vst [vmem:[%s313 + $0x58] sm:$0xff] %v488
        %508 = vst [vmem:[%s313 + $0x60] sm:$0x1] %v492
        %509 = vst [vmem:[%s313 + $0x68] sm:$0x1] %v494
        %v511 = vsel %vm362, %v340, 0
        %v514 = vsel %vm362, %v341, 0
        %v517 = vsel %vm362, %v342, 0
        %v520 = vsel %vm362, %v343, 0
        %v523 = vsel %vm362, %v344, 0
        %v526 = vsel %vm362, %v345, 0
        %v529 = vsel %vm362, %v346, 0
        %531 = vmatprep.subr.mxu0 0.0
        %532 = vmatpush1.msra.mxu0 0.0
        %533 = vmatprep.subr.mxu0 0.0
        %534 = vmatpush1.msra.mxu0 0.0
        %535 = vmatprep.subr.mxu0 0.0
        %536 = vmatpush1.msra.mxu0 0.0
        %537 = vmatprep.subr.mxu0 0.0
        %538 = vmatpush1.msra.mxu0 0.0
        %539 = vmatprep.subr.mxu0 0.0
        %540 = vmatpush1.msra.mxu0 0.0
        %541 = vmatprep.subr.mxu0 0.0
        %542 = vmatpush1.msra.mxu0 0.0
        %543 = vmatprep.subr.mxu0 0.0
        %544 = vmatpush1.msra.mxu0 0.0
        %545 = vmatprep.subr.mxu0 0.0
        %546 = vmatpush1.msra.mxu0 0.0
        %547 = vmatprep.subr.mxu0 0.0
        %548 = vmatpush1.msra.mxu0 0.0
        %549 = vmatprep.subr.mxu0 0.0
        %550 = vmatpush1.msra.mxu0 0.0
        %551 = vmatprep.subr.mxu0 0.0
        %552 = vmatpush1.msra.mxu0 0.0
        %553 = vmatprep.subr.mxu0 0.0
        %554 = vmatpush1.msra.mxu0 0.0
        %555 = vmatprep.subr.mxu0 0.0
        %556 = vmatpush1.msra.mxu0 0.0
        %557 = vmatprep.subr.mxu0 0.0
        %558 = vmatpush1.msra.mxu0 0.0
        %559 = vmatprep.subr.mxu0 0.0
        %560 = vmatpush1.msra.mxu0 0.0
        %561 = vmatprep.subr.mxu0 %v387
        %562 = vmatpush1.msra.mxu0 %v385
        %563 = vmatprep.subr.mxu0 0.0
        %564 = vmatpush2.msra.mxu0 0.0
        %565 = vmatprep.subr.mxu0 0.0
        %566 = vmatpush2.msra.mxu0 0.0
        %567 = vmatprep.subr.mxu0 0.0
        %568 = vmatpush2.msra.mxu0 0.0
        %569 = vmatprep.subr.mxu0 0.0
        %570 = vmatpush2.msra.mxu0 0.0
        %571 = vmatprep.subr.mxu0 0.0
        %572 = vmatpush2.msra.mxu0 0.0
        %573 = vmatprep.subr.mxu0 0.0
        %574 = vmatpush2.msra.mxu0 0.0
        %575 = vmatprep.subr.mxu0 0.0
        %576 = vmatpush2.msra.mxu0 0.0
        %577 = vmatprep.subr.mxu0 0.0
        %578 = vmatpush2.msra.mxu0 0.0
        %579 = vmatprep.subr.mxu0 0.0
        %580 = vmatpush2.msra.mxu0 0.0
        %581 = vmatprep.subr.mxu0 0.0
        %582 = vmatpush2.msra.mxu0 0.0
        %583 = vmatprep.subr.mxu0 0.0
        %584 = vmatpush2.msra.mxu0 0.0
        %585 = vmatprep.subr.mxu0 0.0
        %586 = vmatpush2.msra.mxu0 0.0
        %587 = vmatprep.subr.mxu0 0.0
        %588 = vmatpush2.msra.mxu0 0.0
        %589 = vmatprep.subr.mxu0 0.0
        %590 = vmatpush2.msra.mxu0 0.0
        %591 = vmatprep.subr.mxu0 0.0
        %592 = vmatpush2.msra.mxu0 0.0
        %593 = vmatprep.subr.mxu0 0.0
        %594 = vmatpush2.msra.mxu0 0.0
        %595 = vmatprep.mubr.f32.mxu0 0.0
        %596 = vmatmul.mubr.f32.gmra.mxu0 %v511
        %v597 = vpop.f32.mrf.mxu0
        %v598 = vadd.f32 %v353, %v597
        %v599 = vpop.f32.mrf.mxu0
        %v600 = vadd.f32 %v357, %v599
        %601 = vmatprep.mubr.f32.mxu0 0.0
        %602 = vmatmul.mubr.f32.gmra.mxu0 %v514
        %v603 = vpop.f32.mrf.mxu0
        %v604 = vadd.f32 %v353, %v603
        %v605 = vpop.f32.mrf.mxu0
        %v606 = vadd.f32 %v357, %v605
        %607 = vmatprep.mubr.f32.mxu0 0.0
        %608 = vmatmul.mubr.f32.gmra.mxu0 %v517
        %v609 = vpop.f32.mrf.mxu0
        %v610 = vadd.f32 %v353, %v609
        %v611 = vpop.f32.mrf.mxu0
        %v612 = vadd.f32 %v357, %v611
        %613 = vmatprep.mubr.f32.mxu0 0.0
        %614 = vmatmul.mubr.f32.gmra.mxu0 %v520
        %v615 = vpop.f32.mrf.mxu0
        %v616 = vadd.f32 %v353, %v615
        %v617 = vpop.f32.mrf.mxu0
        %v618 = vadd.f32 %v357, %v617
        %619 = vmatprep.mubr.f32.mxu0 0.0
        %620 = vmatmul.mubr.f32.gmra.mxu0 %v523
        %v621 = vpop.f32.mrf.mxu0
        %v622 = vadd.f32 %v353, %v621
        %v623 = vpop.f32.mrf.mxu0
        %v624 = vadd.f32 %v357, %v623
        %625 = vmatprep.mubr.f32.mxu0 0.0
        %626 = vmatmul.mubr.f32.gmra.mxu0 %v526
        %v627 = vpop.f32.mrf.mxu0
        %v628 = vadd.f32 %v353, %v627
        %v629 = vpop.f32.mrf.mxu0
        %v630 = vadd.f32 %v357, %v629
        %631 = vmatprep.mubr.f32.mxu0 0.0
        %632 = vmatmul.mubr.f32.gmra.mxu0 %v529
        %v633 = vpop.f32.mrf.mxu0
        %v634 = vadd.f32 %v353, %v633
        %v635 = vpop.f32.mrf.mxu0
        %v636 = vadd.f32 %v357, %v635
        %637 = vdwg.mxu0
        %s638 = scalar_lea.vmem %s313, 112 [#allocation2]
        %639 = vst [vmem:[%s638] sm:$0xff] %v598
        %640 = vst [vmem:[%s638 + $0x8] sm:$0xff] %v600
        %641 = vst [vmem:[%s638 + $0x10] sm:$0xff] %v604
        %642 = vst [vmem:[%s638 + $0x18] sm:$0xff] %v606
        %643 = vst [vmem:[%s638 + $0x20] sm:$0xff] %v610
        %644 = vst [vmem:[%s638 + $0x28] sm:$0xff] %v612
        %645 = vst [vmem:[%s638 + $0x30] sm:$0xff] %v616
        %646 = vst [vmem:[%s638 + $0x38] sm:$0xff] %v618
        %647 = vst [vmem:[%s638 + $0x40] sm:$0xff] %v622
        %648 = vst [vmem:[%s638 + $0x48] sm:$0xff] %v624
        %649 = vst [vmem:[%s638 + $0x50] sm:$0xff] %v628
        %650 = vst [vmem:[%s638 + $0x58] sm:$0xff] %v630
        %651 = vst [vmem:[%s638 + $0x60] sm:$0x1] %v634
        %652 = vst [vmem:[%s638 + $0x68] sm:$0x1] %v636
        %v653 = vsel %vm362, %v333, 0.0
        %v654 = vsel %vm362, %v334, 0.0
        %v655 = vadd.f32 %v653, %v654
        %v656 = vsel %vm362, %v335, 0.0
        %v657 = vadd.f32 %v655, %v656
        %v658 = vsel %vm362, %v336, 0.0
        %v659 = vadd.f32 %v657, %v658
        %v660 = vsel %vm362, %v337, 0.0
        %v661 = vadd.f32 %v659, %v660
        %v662 = vsel %vm362, %v338, 0.0
        %v663 = vadd.f32 %v661, %v662
        %vm664 = vcmask 24576
        %v665 = vsel %vm664, %v339, 0.0
        %v666 = vadd.f32 %v663, %v665
        %v667 = vrot.slane %v666, 4
        %v668 = vadd.f32 %v666, %v667
        %v669 = vrot.slane %v668, 2
        %v670 = vadd.f32 %v668, %v669
        %v671 = vrot.slane %v670, 1
        %v672 = vadd.f32 %v670, %v671
        %v673 = vsel %vm362, %v340, 0.0
        %v674 = vsel %vm362, %v341, 0.0
        %v675 = vadd.f32 %v673, %v674
        %v676 = vsel %vm362, %v342, 0.0
        %v677 = vadd.f32 %v675, %v676
        %v678 = vsel %vm362, %v343, 0.0
        %v679 = vadd.f32 %v677, %v678
        %v680 = vsel %vm362, %v344, 0.0
        %v681 = vadd.f32 %v679, %v680
        %v682 = vsel %vm362, %v345, 0.0
        %v683 = vadd.f32 %v681, %v682
        %v684 = vsel %vm664, %v346, 0.0
        %v685 = vadd.f32 %v683, %v684
        %v686 = vrot.slane %v685, 4
        %v687 = vadd.f32 %v685, %v686
        %v688 = vrot.slane %v687, 2
        %v689 = vadd.f32 %v687, %v688
        %v690 = vrot.slane %v689, 1
        %v691 = vadd.f32 %v689, %v690
        %v692 = vrcp.pop 49.0
        %v693 = vmul.f32 %v672, %v692
        %v694 = vmul.f32 %v691, %v692
        %v695 = vld [vmem:[%s3] sm:$0xf]
        %v696 = vld [vmem:[%s4] sm:$0x1]
        %v698 = vlaneseq
        %v699 = vshrl.u32 %v698, 7
        %v700 = vsub.s32 0, %v699
        %v701 = vrot.slane %v696, %v700
        %vm705 = vcmask 1041409
        %v706 = vsel %vm705, %v694, %v693
        %v707 = vsel %vm362, %v706, 0
        %v710 = vsel %vm384, %v695, 0
        %712 = vmatprep.subr.mxu0 0.0
        %713 = vmatpush1.msra.mxu0 0.0
        %714 = vmatprep.subr.mxu0 0.0
        %715 = vmatpush1.msra.mxu0 0.0
        %716 = vmatprep.subr.mxu0 0.0
        %717 = vmatpush1.msra.mxu0 0.0
        %718 = vmatprep.subr.mxu0 0.0
        %719 = vmatpush1.msra.mxu0 0.0
        %720 = vmatprep.subr.mxu0 0.0
        %721 = vmatpush1.msra.mxu0 0.0
        %722 = vmatprep.subr.mxu0 0.0
        %723 = vmatpush1.msra.mxu0 0.0
        %724 = vmatprep.subr.mxu0 0.0
        %725 = vmatpush1.msra.mxu0 0.0
        %726 = vmatprep.subr.mxu0 0.0
        %727 = vmatpush1.msra.mxu0 0.0
        %728 = vmatprep.subr.mxu0 0.0
        %729 = vmatpush1.msra.mxu0 0.0
        %730 = vmatprep.subr.mxu0 0.0
        %731 = vmatpush1.msra.mxu0 0.0
        %732 = vmatprep.subr.mxu0 0.0
        %733 = vmatpush1.msra.mxu0 0.0
        %734 = vmatprep.subr.mxu0 0.0
        %735 = vmatpush1.msra.mxu0 0.0
        %736 = vmatprep.subr.mxu0 0.0
        %737 = vmatpush1.msra.mxu0 0.0
        %738 = vmatprep.subr.mxu0 0.0
        %739 = vmatpush1.msra.mxu0 0.0
        %740 = vmatprep.subr.mxu0 0.0
        %741 = vmatpush1.msra.mxu0 0.0
        %742 = vmatprep.subr.mxu0 0.0
        %743 = vmatpush1.msra.mxu0 %v710
        %744 = vmatprep.subr.mxu0 0.0
        %745 = vmatpush2.msra.mxu0 0.0
        %746 = vmatprep.subr.mxu0 0.0
        %747 = vmatpush2.msra.mxu0 0.0
        %748 = vmatprep.subr.mxu0 0.0
        %749 = vmatpush2.msra.mxu0 0.0
        %750 = vmatprep.subr.mxu0 0.0
        %751 = vmatpush2.msra.mxu0 0.0
        %752 = vmatprep.subr.mxu0 0.0
        %753 = vmatpush2.msra.mxu0 0.0
        %754 = vmatprep.subr.mxu0 0.0
        %755 = vmatpush2.msra.mxu0 0.0
        %756 = vmatprep.subr.mxu0 0.0
        %757 = vmatpush2.msra.mxu0 0.0
        %758 = vmatprep.subr.mxu0 0.0
        %759 = vmatpush2.msra.mxu0 0.0
        %760 = vmatprep.subr.mxu0 0.0
        %761 = vmatpush2.msra.mxu0 0.0
        %762 = vmatprep.subr.mxu0 0.0
        %763 = vmatpush2.msra.mxu0 0.0
        %764 = vmatprep.subr.mxu0 0.0
        %765 = vmatpush2.msra.mxu0 0.0
        %766 = vmatprep.subr.mxu0 0.0
        %767 = vmatpush2.msra.mxu0 0.0
        %768 = vmatprep.subr.mxu0 0.0
        %769 = vmatpush2.msra.mxu0 0.0
        %770 = vmatprep.subr.mxu0 0.0
        %771 = vmatpush2.msra.mxu0 0.0
        %772 = vmatprep.subr.mxu0 0.0
        %773 = vmatpush2.msra.mxu0 0.0
        %774 = vmatprep.subr.mxu0 0.0
        %775 = vmatpush2.msra.mxu0 0.0
        %776 = vmatprep.mubr.f32.mxu0 0.0
        %777 = vmatmul.mubr.f32.gmra.mxu0 %v707
        %v778 = vpop.f32.mrf.mxu0
        %v779 = vadd.f32 %v701, %v778
        %v780 = vpop.f32.mrf.mxu0
        %781 = vdwg.mxu0
        %v782 = vmul.f32 %v779, %v779
        %vm783 = vcmask 254976
        %v784 = vsel %vm783, %v782, 0.0
        %785 = vadd.xlane.f32.xlu0 %v784
        %v786 = vpop.xlane.xlu0 %785
        %v787 = vmax.f32 %v786, 1e-24
        %v788 = vrsqrt.pop %v787
        %v789 = vmul.f32 %v779, %v788
        %v790 = vld [vmem:[%s5] sm:$0xff]
        %v791 = vld [vmem:[%s5 + $0x8] sm:$0xff]
        %v792 = vld [vmem:[%s5 + $0x10] sm:$0xff]
        %v793 = vld [vmem:[%s5 + $0x18] sm:$0xff]
        %v794 = vld [vmem:[%s6] sm:$0x1]
        %v796 = vlaneseq
        %v797 = vshrl.u32 %v796, 7
        %v798 = vsub.s32 0, %v797
        %v799 = vrot.slane %v794, %v798
        %vm801 = vcmask 261120
        %v803 = vsel %vm801, %v789, 0
        %805 = vmatprep.subr.mxu0 0.0
        %806 = vmatpush1.msra.mxu0 0.0
        %807 = vmatprep.subr.mxu0 0.0
        %808 = vmatpush1.msra.mxu0 0.0
        %809 = vmatprep.subr.mxu0 0.0
        %810 = vmatpush1.msra.mxu0 0.0
        %811 = vmatprep.subr.mxu0 0.0
        %812 = vmatpush1.msra.mxu0 0.0
        %813 = vmatprep.subr.mxu0 0.0
        %814 = vmatpush1.msra.mxu0 0.0
        %815 = vmatprep.subr.mxu0 0.0
        %816 = vmatpush1.msra.mxu0 0.0
        %817 = vmatprep.subr.mxu0 0.0
        %818 = vmatpush1.msra.mxu0 0.0
        %819 = vmatprep.subr.mxu0 0.0
        %820 = vmatpush1.msra.mxu0 0.0
        %821 = vmatprep.subr.mxu0 0.0
        %822 = vmatpush1.msra.mxu0 0.0
        %823 = vmatprep.subr.mxu0 0.0
        %824 = vmatpush1.msra.mxu0 0.0
        %825 = vmatprep.subr.mxu0 0.0
        %826 = vmatpush1.msra.mxu0 0.0
        %827 = vmatprep.subr.mxu0 0.0
        %828 = vmatpush1.msra.mxu0 0.0
        %829 = vmatprep.subr.mxu0 0.0
        %830 = vmatpush1.msra.mxu0 %v793
        %831 = vmatprep.subr.mxu0 0.0
        %832 = vmatpush1.msra.mxu0 %v792
        %833 = vmatprep.subr.mxu0 0.0
        %834 = vmatpush1.msra.mxu0 %v791
        %835 = vmatprep.subr.mxu0 0.0
        %836 = vmatpush1.msra.mxu0 %v790
        %837 = vmatprep.subr.mxu0 0.0
        %838 = vmatpush2.msra.mxu0 0.0
        %839 = vmatprep.subr.mxu0 0.0
        %840 = vmatpush2.msra.mxu0 0.0
        %841 = vmatprep.subr.mxu0 0.0
        %842 = vmatpush2.msra.mxu0 0.0
        %843 = vmatprep.subr.mxu0 0.0
        %844 = vmatpush2.msra.mxu0 0.0
        %845 = vmatprep.subr.mxu0 0.0
        %846 = vmatpush2.msra.mxu0 0.0
        %847 = vmatprep.subr.mxu0 0.0
        %848 = vmatpush2.msra.mxu0 0.0
        %849 = vmatprep.subr.mxu0 0.0
        %850 = vmatpush2.msra.mxu0 0.0
        %851 = vmatprep.subr.mxu0 0.0
        %852 = vmatpush2.msra.mxu0 0.0
        %853 = vmatprep.subr.mxu0 0.0
        %854 = vmatpush2.msra.mxu0 0.0
        %855 = vmatprep.subr.mxu0 0.0
        %856 = vmatpush2.msra.mxu0 0.0
        %857 = vmatprep.subr.mxu0 0.0
        %858 = vmatpush2.msra.mxu0 0.0
        %859 = vmatprep.subr.mxu0 0.0
        %860 = vmatpush2.msra.mxu0 0.0
        %861 = vmatprep.subr.mxu0 0.0
        %862 = vmatpush2.msra.mxu0 0.0
        %863 = vmatprep.subr.mxu0 0.0
        %864 = vmatpush2.msra.mxu0 0.0
        %865 = vmatprep.subr.mxu0 0.0
        %866 = vmatpush2.msra.mxu0 0.0
        %867 = vmatprep.subr.mxu0 0.0
        %868 = vmatpush2.msra.mxu0 0.0
        %869 = vmatprep.mubr.f32.mxu0 0.0
        %870 = vmatmul.mubr.f32.gmra.mxu0 %v803
        %v871 = vpop.f32.mrf.mxu0
        %v872 = vadd.f32 %v799, %v871
        %v873 = vpop.f32.mrf.mxu0
        %874 = vdwg.mxu0
        %v875 = vmul.f32 %v872, %v872
        %vm876 = vcmask 123904
        %v877 = vsel %vm876, %v875, 0.0
        %878 = vadd.xlane.f32.xlu0 %v877
        %v879 = vpop.xlane.xlu0 %878
        %v880 = vmax.f32 %v879, 1e-24
        %v881 = vrsqrt.pop %v880
        %v882 = vmul.f32 %v872, %v881
        %883 = vst [vmem:[%s320] sm:$0x3] 0.0
        %884 = vst.msk [vmem:[%s320] sm:$0x3] %vm783, %v789
        %886 = vrot.lane.b32.xlu0 %v882, 32
        %v887 = vpop.permute.xlu0 %886
        %vm889 = vcmask 386304
        %890 = vst.msk [vmem:[%s320] sm:$0x3] %vm889, %v887
        %s891 = sand.u32 %s188, 1
        %s892 = sand.u32 %s188, 1
        %s893 = smul.addr %s892, 224
        %s894 = scalar_lea.vmem [#allocation2], %s893
        %s895 = sand.u32 %s214, 1
        %s896 = scalar_lea.sflag [#allocation4], %s895
        %s897 = sand.u32 %s214, 1
        %s898 = smul.addr %s897, 2
        %s899 = scalar_lea.vmem [#allocation3], %s898
        // Predicated region
        $region49: #{tpu_custom_call.1} parent=47 // pred_check
          %p900 = pneg %p198
        $region50: #{tpu_custom_call.1} parent=47 // pred_check_branch
          %902 = sbr.rel (%p900) target = $region52
        $region51: #{tpu_custom_call.1} parent=47 // pred_region
          %s903 = smul.u32 2, %s23
          %s904 = smul.addr %s903, 8
          %s905 = scalar_lea.vmem %s7, %s904
          // Predicated region
          $region53: #{tpu_custom_call.1} parent=51 // pred_check
            _
          $region54: #{tpu_custom_call.1} parent=51 // pred_check_branch
            %907 = sbr.rel (0) target = $region56
          $region55: #{tpu_custom_call.1} parent=51 // pred_region
            // Predicated region
            $region57: #{tpu_custom_call.1} parent=55 // pred_check
              _
            $region58: #{tpu_custom_call.1} parent=55 // pred_check_branch
              %909 = sbr.rel (0) target = $region60
            $region59: #{tpu_custom_call.1} parent=55 // pred_region
              loop: start=0, step=1, limit=1
              $region61: #{tpu_custom_call.1} parent=59 // loop_pre_header
                _
              $region62: #{tpu_custom_call.1} parent=59 // loop_header
                %s911 = sphi 0, %s915
                %p912 = scmp.ge.s32.totalorder %s911, 1
                %s916 = sphi %s894, %s894
                %s917 = sphi %s905, %s905
              $region63: #{tpu_custom_call.1} parent=59 // loop_header_branch
                %914 = sbr.rel (%p912) target = $region67
              $region64: #{tpu_custom_call.1} parent=59 // loop_body
                %v918 = vld [vmem:[%s916] sm:$0xff]
                %919 = vst [vmem:[%s917] sm:$0xff] %v918
                %v920 = vld [vmem:[%s916 + $0x8] sm:$0xff]
                %921 = vst [vmem:[%s917 + $0x8] sm:$0xff] %v920
                %v922 = vld [vmem:[%s916 + $0x10] sm:$0xff]
                %923 = vst [vmem:[%s917 + $0x40] sm:$0xff] %v922
                %v924 = vld [vmem:[%s916 + $0x18] sm:$0xff]
                %925 = vst [vmem:[%s917 + $0x48] sm:$0xff] %v924
                %v926 = vld [vmem:[%s916 + $0x20] sm:$0xff]
                %927 = vst [vmem:[%s917 + $0x80] sm:$0xff] %v926
                %v928 = vld [vmem:[%s916 + $0x28] sm:$0xff]
                %929 = vst [vmem:[%s917 + $0x88] sm:$0xff] %v928
                %v930 = vld [vmem:[%s916 + $0x30] sm:$0xff]
                %931 = vst [vmem:[%s917 + $0xc0] sm:$0xff] %v930
                %v932 = vld [vmem:[%s916 + $0x38] sm:$0xff]
                %933 = vst [vmem:[%s917 + $0xc8] sm:$0xff] %v932
                %v934 = vld [vmem:[%s916 + $0x40] sm:$0xff]
                %935 = vst [vmem:[%s917 + $0x100] sm:$0xff] %v934
                %v936 = vld [vmem:[%s916 + $0x48] sm:$0xff]
                %937 = vst [vmem:[%s917 + $0x108] sm:$0xff] %v936
                %v938 = vld [vmem:[%s916 + $0x50] sm:$0xff]
                %939 = vst [vmem:[%s917 + $0x140] sm:$0xff] %v938
                %v940 = vld [vmem:[%s916 + $0x58] sm:$0xff]
                %941 = vst [vmem:[%s917 + $0x148] sm:$0xff] %v940
                %v942 = vld [vmem:[%s916 + $0x60] sm:$0xff]
                %943 = vst [vmem:[%s917 + $0x180] sm:$0xff] %v942
                %v944 = vld [vmem:[%s916 + $0x68] sm:$0xff]
                %945 = vst [vmem:[%s917 + $0x188] sm:$0xff] %v944
                %v946 = vld [vmem:[%s916 + $0x70] sm:$0xff]
                %947 = vst [vmem:[%s917 + $0x1c0] sm:$0xff] %v946
                %v948 = vld [vmem:[%s916 + $0x78] sm:$0xff]
                %949 = vst [vmem:[%s917 + $0x1c8] sm:$0xff] %v948
                %v950 = vld [vmem:[%s916 + $0x80] sm:$0xff]
                %951 = vst [vmem:[%s917 + $0x200] sm:$0xff] %v950
                %v952 = vld [vmem:[%s916 + $0x88] sm:$0xff]
                %953 = vst [vmem:[%s917 + $0x208] sm:$0xff] %v952
                %v954 = vld [vmem:[%s916 + $0x90] sm:$0xff]
                %955 = vst [vmem:[%s917 + $0x240] sm:$0xff] %v954
                %v956 = vld [vmem:[%s916 + $0x98] sm:$0xff]
                %957 = vst [vmem:[%s917 + $0x248] sm:$0xff] %v956
                %v958 = vld [vmem:[%s916 + $0xa0] sm:$0xff]
                %959 = vst [vmem:[%s917 + $0x280] sm:$0xff] %v958
                %v960 = vld [vmem:[%s916 + $0xa8] sm:$0xff]
                %961 = vst [vmem:[%s917 + $0x288] sm:$0xff] %v960
                %v962 = vld [vmem:[%s916 + $0xb0] sm:$0xff]
                %963 = vst [vmem:[%s917 + $0x2c0] sm:$0xff] %v962
                %v964 = vld [vmem:[%s916 + $0xb8] sm:$0xff]
                %965 = vst [vmem:[%s917 + $0x2c8] sm:$0xff] %v964
                %v966 = vld [vmem:[%s916 + $0xc0] sm:$0xff]
                %967 = vst [vmem:[%s917 + $0x300] sm:$0xff] %v966
                %v968 = vld [vmem:[%s916 + $0xc8] sm:$0xff]
                %969 = vst [vmem:[%s917 + $0x308] sm:$0xff] %v968
                %v970 = vld [vmem:[%s916 + $0xd0] sm:$0xff]
                %971 = vst [vmem:[%s917 + $0x340] sm:$0xff] %v970
                %v972 = vld [vmem:[%s916 + $0xd8] sm:$0xff]
                %973 = vst [vmem:[%s917 + $0x348] sm:$0xff] %v972
              $region65: #{tpu_custom_call.1} parent=59 // loop_footer
                %s915 = sadd.s32 1, %s911
              $region66: #{tpu_custom_call.1} parent=59 // loop_footer_branch
                %910 = sbr.rel target = $region62
              $region67: #{tpu_custom_call.1} parent=59 // loop_exit
                _
            $region60: #{tpu_custom_call.1} parent=55 // pred_fallthru
              _
            // Predicated region
            $region68: #{tpu_custom_call.1} parent=55 // pred_check
              _
            $region69: #{tpu_custom_call.1} parent=55 // pred_check_branch
              %975 = sbr.rel target = $region71
            $region70: #{tpu_custom_call.1} parent=55 // pred_region
              _
            $region71: #{tpu_custom_call.1} parent=55 // pred_fallthru
              _
          $region56: #{tpu_custom_call.1} parent=51 // pred_fallthru
            _
          %976 = vnop
        $region52: #{tpu_custom_call.1} parent=47 // pred_fallthru
          _
        // Predicated region
        $region72: #{tpu_custom_call.1} parent=47 // pred_check
          %p977 = pneg %p224
        $region73: #{tpu_custom_call.1} parent=47 // pred_check_branch
          %979 = sbr.rel (%p977) target = $region75
        $region74: #{tpu_custom_call.1} parent=47 // pred_region
          %s981 = ssub.s32 32, 32
          %982 = vsyncadd %s896, %s981
          %s983 = smul.addr %s23, 32
          %s984 = scalar_lea.hbm %s8, %s983
          %s986 = sshll.u32 %s899, 4
          %s987 = int_to_ptr.vmem [resolvable:$true] %s986
          %989 = dma.vmem_to_hbm [thread:$0]  %s987, 32, %s984, %s896
        $region75: #{tpu_custom_call.1} parent=47 // pred_fallthru
          _
      $region48: #{tpu_custom_call.1} parent=5 // pred_fallthru
        _
      %p990 = scmp.le.s32.totalorder 2, %s18
      // Predicated region
      $region76: #{tpu_custom_call.1} parent=5 // pred_check
        %p991 = pneg %p990
      $region77: #{tpu_custom_call.1} parent=5 // pred_check_branch
        %993 = sbr.rel (%p991) target = $region79
      $region78: #{tpu_custom_call.1} parent=5 // pred_region
        %s994 = ssub.s32 %s18, 2
        // Predicated region
        $region80: #{tpu_custom_call.1} parent=78 // pred_check
          %p995 = pneg %p204
        $region81: #{tpu_custom_call.1} parent=78 // pred_check_branch
          %997 = sbr.rel (%p995) target = $region83
        $region82: #{tpu_custom_call.1} parent=78 // pred_region
          %s998 = sand.u32 %s189, 1
          %s999 = sand.u32 %s189, 1
          %s1000 = smul.addr %s999, 224
          %s1001 = scalar_lea.vmem [#allocation2], %s1000
        $region83: #{tpu_custom_call.1} parent=78 // pred_fallthru
          _
        // Predicated region
        $region84: #{tpu_custom_call.1} parent=78 // pred_check
          %p1002 = pneg %p230
        $region85: #{tpu_custom_call.1} parent=78 // pred_check_branch
          %1004 = sbr.rel (%p1002) target = $region87
        $region86: #{tpu_custom_call.1} parent=78 // pred_region
          %s1005 = sand.u32 %s215, 1
          %s1006 = scalar_lea.sflag [#allocation4], %s1005
          %s1007 = sand.u32 %s215, 1
          %s1008 = smul.addr %s1007, 2
          %s1009 = scalar_lea.vmem [#allocation3], %s1008
          %1010 = dma.done %s1006, 32
        $region87: #{tpu_custom_call.1} parent=78 // pred_fallthru
          _
      $region79: #{tpu_custom_call.1} parent=5 // pred_fallthru
        _
    $region6: #{tpu_custom_call.1} parent=1 // loop_footer
      %s22 = sadd.s32 1, %s18
    $region7: #{tpu_custom_call.1} parent=1 // loop_footer_branch
      %17 = sbr.rel target = $region3
    $region8: #{tpu_custom_call.1} parent=1 // loop_exit
      _
    %1011 = vsyncpa [#allocation4], 1
    %s1012 = scalar_lea.sflag [#allocation4], 1
    %1013 = vsyncpa %s1012, 1

</llo_original>
